<compile_context>
chip_gen: v5e
topology: v5e:2x2
jax: 0.10.0
libtpu: 0.0.40
codegen_flags: <defaults>
</compile_context>

<pallas_src>
import jax
import jax.numpy as jnp
from jax.experimental import pallas as pl
from jax.experimental.pallas import tpu as pltpu


# ---------------------------------------------------------------------------
# Fused kernel: one program per batch tile.
# ---------------------------------------------------------------------------
def _fused_embedding_kernel(ids_ref, table_ref, x_ref, w_ref, b_ref, o_ref):
    """ids_ref:   (tb, FS)          int32  sparse ids for this batch tile
       table_ref: (V, E)            f32    full embedding table (VMEM resident)
       x_ref:     (tb, Din)         f32    dense inputs for this batch tile
       w_ref:     (Din, Din*E)      f32    linear weight (pre-transposed)
       b_ref:     (1, Din*E)        f32    linear bias
       o_ref:     (tb, (FS+Din)*E)  f32    lane-dense flattened output tile
    """
    tb, fs = ids_ref.shape
    v, e = table_ref.shape

    table = table_ref[...]                                   # (V, E), loaded once
    ids = ids_ref[...]                                       # (tb, FS) int32
    col = jax.lax.broadcasted_iota(jnp.int32, (tb, v), 1)    # lane index 0..V-1

    # Sparse path: gather row ids[b, f] via one-hot(id) @ table on the MXU.
    # Out-of-range ids produce a zero row (PyTorch would raise) — no OOB memory
    # access is possible with this formulation.
    pieces = []
    for f in range(fs):                                      # static unroll, FS small
        onehot = (ids[:, f:f + 1] == col).astype(table.dtype)          # (tb, V)
        pieces.append(
            jnp.dot(onehot, table, preferred_element_type=jnp.float32))  # (tb, E)

    # Dense path: x @ W^T + b.
    dense = (
        jnp.dot(x_ref[...], w_ref[...], preferred_element_type=jnp.float32)
        + b_ref[...]
    )                                                        # (tb, Din*E)
    pieces.append(dense)

    # Single dense (unmasked) store of the whole output tile.
    o_ref[...] = jnp.concatenate(pieces, axis=-1).astype(o_ref.dtype)


def _pick_batch_tile(b: int) -> int:
    # Small batches: one full-extent tile (always a legal block).
    if b <= 512:
        return b
    for t in (512, 256, 128, 64, 32, 16, 8):
        if b % t == 0:
            return t
    return b


def fused_embedding(ids: jax.Array, table: jax.Array, x: jax.Array,
                    w_t: jax.Array, bias: jax.Array) -> jax.Array:
    """Returns the flattened output (B, (F_sparse + Din) * E)."""
    b, fs = ids.shape
    v, e = table.shape
    din = x.shape[1]
    dout = w_t.shape[1]
    assert dout == din * e
    f_total = fs + din

    # VMEM-resident-table path: keep a comfortable budget (v7x: 64 MiB physical,
    # ~32 MiB default scoped VMEM, table is double-buffered by the pipeline).
    assert v * e * table.dtype.itemsize <= 16 * 1024 * 1024, (
        "embedding table too large for the VMEM-resident fused path")
    # TODO(synk): add an HBM-gather fallback (scalar-prefetch index_map over id
    # tiles, pl.Buffered(3)) for tables that do not fit in VMEM.

    tb = _pick_batch_tile(b)
    grid = (pl.cdiv(b, tb),)

    return pl.pallas_call(
        _fused_embedding_kernel,
        out_shape=jax.ShapeDtypeStruct((b, f_total * e), jnp.float32),
        grid_spec=pl.GridSpec(
            grid=grid,
            in_specs=[
                pl.BlockSpec((tb, fs), lambda i: (i, 0)),      # ids (per tile)
                pl.BlockSpec((v, e), lambda i: (0, 0)),        # table (resident)
                pl.BlockSpec((tb, din), lambda i: (i, 0)),     # dense inputs
                pl.BlockSpec((din, dout), lambda i: (0, 0)),   # weight (resident)
                pl.BlockSpec((1, dout), lambda i: (0, 0)),     # bias (resident)
            ],
            out_specs=pl.BlockSpec((tb, f_total * e), lambda i: (i, 0)),
        ),
        compiler_params=pltpu.CompilerParams(
            dimension_semantics=("parallel",)),   # batch tiles shard across TCs (v7x)
    )(ids, table, x, w_t, bias)


# ---------------------------------------------------------------------------
# Module wrapper (parameters + the free reshape to (B, F, E)).
# ---------------------------------------------------------------------------
class EmbeddingPallas:
    def __init__(self, num_sparse_emb: int, dim_emb: int, dim_input_dense: int,
                 bias: bool = True, key=None):
        self.dim_emb = dim_emb
        self.dim_input_dense = dim_input_dense
        key = key if key is not None else jax.random.PRNGKey(0)
        k1, k2, k3 = jax.random.split(key, 3)
        # nn.Embedding weight: (num_sparse_emb, dim_emb), N(0,1) init
        self.table = jax.random.normal(k1, (num_sparse_emb, dim_emb), jnp.float32)
        # nn.Linear weight: (out, in) in PyTorch; keep (in, out) for the kernel
        dout = dim_input_dense * dim_emb
        bound = 1.0 / (dim_input_dense ** 0.5)
        w = jax.random.uniform(k2, (dout, dim_input_dense), jnp.float32, -bound, bound)
        self.w_t = jnp.transpose(w)                           # (Din, Din*E)
        if bias:
            self.b = jax.random.uniform(k3, (1, dout), jnp.float32, -bound, bound)
        else:
            self.b = jnp.zeros((1, dout), jnp.float32)

    def __call__(self, sparse_inputs: jax.Array, dense_inputs: jax.Array) -> jax.Array:
        bsz, n_sparse = sparse_inputs.shape
        out_flat = fused_embedding(
            sparse_inputs.astype(jnp.int32), self.table,
            dense_inputs, self.w_t, self.b)
        # Free (contiguous) reshape to the PyTorch output layout.
        return out_flat.reshape(bsz, n_sparse + self.dim_input_dense, self.dim_emb)


if __name__ == "__main__":
    num_sparse_emb = 64
    dim_emb = 32
    dim_input_dense = 8
    batch = 2
    n_sparse_fields = 4

    key = jax.random.PRNGKey(0)
    k_ids, k_dense, k_params = jax.random.split(key, 3)
    sparse_inputs = jax.random.randint(
        k_ids, (batch, n_sparse_fields), 0, num_sparse_emb, dtype=jnp.int32)
    dense_inputs = jax.random.normal(k_dense, (batch, dim_input_dense), jnp.float32)

    model = EmbeddingPallas(num_sparse_emb, dim_emb, dim_input_dense, bias=True,
                            key=k_params)
    out = model(sparse_inputs, dense_inputs)
    jax.block_until_ready(out)

    # Reference check in plain JAX (same math as the PyTorch forward).
    ref_sparse = jnp.take(model.table, sparse_inputs.reshape(-1), axis=0).reshape(
        batch, n_sparse_fields, dim_emb)
    ref_dense = (dense_inputs @ model.w_t + model.b).reshape(
        batch, dim_input_dense, dim_emb)
    ref = jnp.concatenate((ref_sparse, ref_dense), axis=1)

    assert out.shape == (batch, n_sparse_fields + dim_input_dense, dim_emb), out.shape
    assert jnp.allclose(out, ref, atol=1e-4, rtol=1e-4), float(
        jnp.max(jnp.abs(out - ref)))
    print("KERNEL_OK")
</pallas_src>

<mosaic_0001>
module attributes {stable_mosaic.version = 11 : i64} {
  func.func @_fused_embedding_kernel(%arg0: i32, %arg1: memref<2x4xi32, #tpu.memory_space<vmem>>, %arg2: memref<64x32xf32, #tpu.memory_space<vmem>>, %arg3: memref<2x8xf32, #tpu.memory_space<vmem>>, %arg4: memref<8x256xf32, #tpu.memory_space<vmem>>, %arg5: memref<1x256xf32, #tpu.memory_space<vmem>>, %arg6: memref<2x384xf32, #tpu.memory_space<vmem>>) attributes {dimension_semantics = [#tpu.dimension_semantics<parallel>], iteration_bounds = array<i64: 1>, scalar_prefetch = 0 : i64, scratch_operands = 0 : i64, tpu.core_type = #tpu.core_type<tc>, window_params = [{transform_indices = @transform_0, window_bounds = array<i64: 2, 4>}, {pipeline_mode = #tpu.pipeline_mode<synchronous>, transform_indices = @transform_1, window_bounds = array<i64: 64, 32>}, {transform_indices = @transform_2, window_bounds = array<i64: 2, 8>}, {pipeline_mode = #tpu.pipeline_mode<synchronous>, transform_indices = @transform_3, window_bounds = array<i64: 8, 256>}, {pipeline_mode = #tpu.pipeline_mode<synchronous>, transform_indices = @transform_4, window_bounds = array<i64: 1, 256>}, {transform_indices = @transform_5, window_bounds = array<i64: 2, 384>}]} {
    %c0 = arith.constant 0 : index
    %c0_0 = arith.constant 0 : index
    %0 = vector.load %arg2[%c0, %c0_0] : memref<64x32xf32, #tpu.memory_space<vmem>>, vector<64x32xf32>
    %c0_1 = arith.constant 0 : index
    %c0_2 = arith.constant 0 : index
    %1 = vector.load %arg1[%c0_1, %c0_2] : memref<2x4xi32, #tpu.memory_space<vmem>>, vector<2x4xi32>
    %2 = tpu.iota {dimensions = array<i32: 1>} : vector<2x64xi32>
    %3 = vector.extract_strided_slice %1 {offsets = [0, 0], sizes = [2, 1], strides = [1, 1]} : vector<2x4xi32> to vector<2x1xi32>
    %4 = vector.broadcast %3 : vector<2x1xi32> to vector<2x64xi32>
    %5 = arith.cmpi eq, %4, %2 : vector<2x64xi32>
    %6 = arith.extui %5 : vector<2x64xi1> to vector<2x64xi32>
    %7 = arith.sitofp %6 : vector<2x64xi32> to vector<2x64xf32>
    %cst = arith.constant dense<0.000000e+00> : vector<2x32xf32>
    %8 = tpu.matmul %7, %0, %cst {dimension_numbers = #tpu.dot_dimension_numbers<[1], [0], [0], [1], [0, 0, 1, 1], [], []>} : vector<2x64xf32>, vector<64x32xf32>, vector<2x32xf32> -> vector<2x32xf32>
    %9 = vector.extract_strided_slice %1 {offsets = [0, 1], sizes = [2, 1], strides = [1, 1]} : vector<2x4xi32> to vector<2x1xi32>
    %10 = vector.broadcast %9 : vector<2x1xi32> to vector<2x64xi32>
    %11 = arith.cmpi eq, %10, %2 : vector<2x64xi32>
    %12 = arith.extui %11 : vector<2x64xi1> to vector<2x64xi32>
    %13 = arith.sitofp %12 : vector<2x64xi32> to vector<2x64xf32>
    %cst_3 = arith.constant dense<0.000000e+00> : vector<2x32xf32>
    %14 = tpu.matmul %13, %0, %cst_3 {dimension_numbers = #tpu.dot_dimension_numbers<[1], [0], [0], [1], [0, 0, 1, 1], [], []>} : vector<2x64xf32>, vector<64x32xf32>, vector<2x32xf32> -> vector<2x32xf32>
    %15 = vector.extract_strided_slice %1 {offsets = [0, 2], sizes = [2, 1], strides = [1, 1]} : vector<2x4xi32> to vector<2x1xi32>
    %16 = vector.broadcast %15 : vector<2x1xi32> to vector<2x64xi32>
    %17 = arith.cmpi eq, %16, %2 : vector<2x64xi32>
    %18 = arith.extui %17 : vector<2x64xi1> to vector<2x64xi32>
    %19 = arith.sitofp %18 : vector<2x64xi32> to vector<2x64xf32>
    %cst_4 = arith.constant dense<0.000000e+00> : vector<2x32xf32>
    %20 = tpu.matmul %19, %0, %cst_4 {dimension_numbers = #tpu.dot_dimension_numbers<[1], [0], [0], [1], [0, 0, 1, 1], [], []>} : vector<2x64xf32>, vector<64x32xf32>, vector<2x32xf32> -> vector<2x32xf32>
    %21 = vector.extract_strided_slice %1 {offsets = [0, 3], sizes = [2, 1], strides = [1, 1]} : vector<2x4xi32> to vector<2x1xi32>
    %22 = vector.broadcast %21 : vector<2x1xi32> to vector<2x64xi32>
    %23 = arith.cmpi eq, %22, %2 : vector<2x64xi32>
    %24 = arith.extui %23 : vector<2x64xi1> to vector<2x64xi32>
    %25 = arith.sitofp %24 : vector<2x64xi32> to vector<2x64xf32>
    %cst_5 = arith.constant dense<0.000000e+00> : vector<2x32xf32>
    %26 = tpu.matmul %25, %0, %cst_5 {dimension_numbers = #tpu.dot_dimension_numbers<[1], [0], [0], [1], [0, 0, 1, 1], [], []>} : vector<2x64xf32>, vector<64x32xf32>, vector<2x32xf32> -> vector<2x32xf32>
    %c0_6 = arith.constant 0 : index
    %c0_7 = arith.constant 0 : index
    %27 = vector.load %arg3[%c0_6, %c0_7] : memref<2x8xf32, #tpu.memory_space<vmem>>, vector<2x8xf32>
    %c0_8 = arith.constant 0 : index
    %c0_9 = arith.constant 0 : index
    %28 = vector.load %arg4[%c0_8, %c0_9] : memref<8x256xf32, #tpu.memory_space<vmem>>, vector<8x256xf32>
    %cst_10 = arith.constant dense<0.000000e+00> : vector<2x256xf32>
    %29 = tpu.matmul %27, %28, %cst_10 {dimension_numbers = #tpu.dot_dimension_numbers<[1], [0], [0], [1], [0, 0, 1, 1], [], []>} : vector<2x8xf32>, vector<8x256xf32>, vector<2x256xf32> -> vector<2x256xf32>
    %c0_11 = arith.constant 0 : index
    %c0_12 = arith.constant 0 : index
    %30 = vector.load %arg5[%c0_11, %c0_12] : memref<1x256xf32, #tpu.memory_space<vmem>>, vector<1x256xf32>
    %31 = vector.broadcast %30 : vector<1x256xf32> to vector<2x256xf32>
    %32 = arith.addf %29, %31 : vector<2x256xf32>
    %33 = tpu.concatenate %8, %14, %20, %26, %32 in 1 : vector<2x32xf32>, vector<2x32xf32>, vector<2x32xf32>, vector<2x32xf32>, vector<2x256xf32> -> vector<2x384xf32>
    %c0_13 = arith.constant 0 : index
    %c0_14 = arith.constant 0 : index
    %34 = vector.load %arg6[%c0_13, %c0_14] : memref<2x384xf32, #tpu.memory_space<vmem>>, vector<2x384xf32>
    tpu.vector_store %arg6[%c0_13, %c0_14], %33 {strides = array<i32>} : memref<2x384xf32, #tpu.memory_space<vmem>>, vector<2x384xf32>,
    return
  }
  func.func @transform_0(%arg0: i32) -> (i32, i32) {
    %c0_i32 = arith.constant 0 : i32
    %c0_i32_0 = arith.constant 0 : i32
    return %arg0, %c0_i32 : i32, i32
  }
  func.func @transform_1(%arg0: i32) -> (i32, i32) {
    %c0_i32 = arith.constant 0 : i32
    %c0_i32_0 = arith.constant 0 : i32
    %c0_i32_1 = arith.constant 0 : i32
    return %c0_i32, %c0_i32_0 : i32, i32
  }
  func.func @transform_2(%arg0: i32) -> (i32, i32) {
    %c0_i32 = arith.constant 0 : i32
    %c0_i32_0 = arith.constant 0 : i32
    return %arg0, %c0_i32 : i32, i32
  }
  func.func @transform_3(%arg0: i32) -> (i32, i32) {
    %c0_i32 = arith.constant 0 : i32
    %c0_i32_0 = arith.constant 0 : i32
    %c0_i32_1 = arith.constant 0 : i32
    return %c0_i32, %c0_i32_0 : i32, i32
  }
  func.func @transform_4(%arg0: i32) -> (i32, i32) {
    %c0_i32 = arith.constant 0 : i32
    %c0_i32_0 = arith.constant 0 : i32
    %c0_i32_1 = arith.constant 0 : i32
    return %c0_i32, %c0_i32_0 : i32, i32
  }
  func.func @transform_5(%arg0: i32) -> (i32, i32) {
    %c0_i32 = arith.constant 0 : i32
    %c0_i32_0 = arith.constant 0 : i32
    return %arg0, %c0_i32 : i32, i32
  }
}

</mosaic_0001>

<llo_original>
// kernel: tpu_custom_call.1
$region0: #{tpu_custom_call.1}
  #allocation0 [shape = 'u32[]', space=smem, size = 0x4, offset = 0x4, fixed_abs, tag = 'smem constant byte address 0x4 - core index']
  #allocation1 [shape = 'u32[72,128]{1,0:T(1,128)}', space=vmem, size = 0x9000, scoped, tag = 'internal scratch']
  %s0 = inlined_call_operand.vmem [shape: s32[2,4], index: 0, kind: input, shape index: {}]
  %s1 = inlined_call_operand.vmem [shape: f32[64,32], index: 1, kind: input, shape index: {}]
  %s2 = inlined_call_operand.vmem [shape: f32[2,8], index: 2, kind: input, shape index: {}]
  %s3 = inlined_call_operand.vmem [shape: f32[8,256], index: 3, kind: input, shape index: {}]
  %s4 = inlined_call_operand.vmem [shape: f32[1,256], index: 4, kind: input, shape index: {}]
  %s5 = inlined_call_operand.hbm [shape: f32[2,384], index: 5, kind: output, shape index: {}]
  %s6 = sld [smem:[#allocation0]]
  $region30: #{tpu_custom_call.1} parent=0
    _
  %s8 = ssub.s32 1, %s6
  %s9 = scalar_select 0, %s8, %s6
  $region1: #{tpu_custom_call.1} parent=0
    #allocation2 [shape = 'u8[3072]{0}', space=vmem, size = 0xc00, scoped, tag = 'output window, operand 0, single buffered']
    #allocation3 [shape = 's32[1]{0}', space=sflag, size = 0x4, scoped, tag = 'scoped memory for tpu_custom_call.1']
    %10 = vsyncpa [#allocation3], 0
    // Predicated region
    $region2: #{tpu_custom_call.1} parent=1 // pred_check
      _
    $region3: #{tpu_custom_call.1} parent=1 // pred_check_branch
      %12 = sbr.rel (0) target = $region5
    $region4: #{tpu_custom_call.1} parent=1 // pred_region
      _
    $region5: #{tpu_custom_call.1} parent=1 // pred_fallthru
      _
    // Predicated region
    $region6: #{tpu_custom_call.1} parent=1 // pred_check
      _
    $region7: #{tpu_custom_call.1} parent=1 // pred_check_branch
      %14 = sbr.rel (0) target = $region9
    $region8: #{tpu_custom_call.1} parent=1 // pred_region
      _
    $region9: #{tpu_custom_call.1} parent=1 // pred_fallthru
      _
    // Predicated region
    $region10: #{tpu_custom_call.1} parent=1 // pred_check
      _
    $region11: #{tpu_custom_call.1} parent=1 // pred_check_branch
      %16 = sbr.rel (0) target = $region13
    $region12: #{tpu_custom_call.1} parent=1 // pred_region
      _
    $region13: #{tpu_custom_call.1} parent=1 // pred_fallthru
      _
    // Predicated region
    $region14: #{tpu_custom_call.1} parent=1 // pred_check
      _
    $region15: #{tpu_custom_call.1} parent=1 // pred_check_branch
      %18 = sbr.rel (0) target = $region17
    $region16: #{tpu_custom_call.1} parent=1 // pred_region
      _
    $region17: #{tpu_custom_call.1} parent=1 // pred_fallthru
      _
    // Predicated region
    $region18: #{tpu_custom_call.1} parent=1 // pred_check
      _
    $region19: #{tpu_custom_call.1} parent=1 // pred_check_branch
      %20 = sbr.rel (0) target = $region21
    $region20: #{tpu_custom_call.1} parent=1 // pred_region
      _
    $region21: #{tpu_custom_call.1} parent=1 // pred_fallthru
      _
    %v21 = vld [vmem:[%s1] sm:$0xff]
    %v22 = vld [vmem:[%s1 + $0x8] sm:$0xff]
    %v23 = vld [vmem:[%s1 + $0x10] sm:$0xff]
    %v24 = vld [vmem:[%s1 + $0x18] sm:$0xff]
    %v25 = vld [vmem:[%s1 + $0x20] sm:$0xff]
    %v26 = vld [vmem:[%s1 + $0x28] sm:$0xff]
    %v27 = vld [vmem:[%s1 + $0x30] sm:$0xff]
    %v28 = vld [vmem:[%s1 + $0x38] sm:$0xff]
    %v29 = vld [vmem:[%s0] sm:$0x3]
    %v30 = vlaneseq
    %v31 = vand.u32 %v30, 127
    %32 = vset.pattern.permute.xlu0 0
    %33 = vperm.xlu0 %32, %v29
    %v34 = vpop.permute.xlu0 %33
    %vm35 = vcmp.eq.s32.totalorder %v34, %v31
    %v36 = vsel %vm35, 1, 0
    %v37 = vcvt.s32.f32 %v36
    %vm38 = vcmask 523264
    %v40 = vsel %vm38, %v37, 0
    %42 = vmatpush.msra.mxu0 0.0
    %43 = vmatpush.msra.mxu0 0.0
    %44 = vmatpush.msra.mxu0 0.0
    %45 = vmatpush.msra.mxu0 0.0
    %46 = vmatpush.msra.mxu0 0.0
    %47 = vmatpush.msra.mxu0 0.0
    %48 = vmatpush.msra.mxu0 0.0
    %49 = vmatpush.msra.mxu0 0.0
    %50 = vmatpush.msra.mxu0 %v28
    %51 = vmatpush.msra.mxu0 %v27
    %52 = vmatpush.msra.mxu0 %v26
    %53 = vmatpush.msra.mxu0 %v25
    %54 = vmatpush.msra.mxu0 %v24
    %55 = vmatpush.msra.mxu0 %v23
    %56 = vmatpush.msra.mxu0 %v22
    %57 = vmatpush.msra.mxu0 %v21
    %58 = vmatmul.f32.gmra.mxu0 %v40
    %v59 = vpop.f32.mrf.mxu0
    %v60 = vadd.f32 0.0, %v59
    %61 = vdwg.mxu0
    %62 = vset.pattern.permute.xlu0 1
    %63 = vperm.xlu0 %62, %v29
    %v64 = vpop.permute.xlu0 %63
    %vm65 = vcmp.eq.s32.totalorder %v64, %v31
    %v66 = vsel %vm65, 1, 0
    %v67 = vcvt.s32.f32 %v66
    %v69 = vsel %vm38, %v67, 0
    %71 = vmatpush.msra.mxu0 0.0
    %72 = vmatpush.msra.mxu0 0.0
    %73 = vmatpush.msra.mxu0 0.0
    %74 = vmatpush.msra.mxu0 0.0
    %75 = vmatpush.msra.mxu0 0.0
    %76 = vmatpush.msra.mxu0 0.0
    %77 = vmatpush.msra.mxu0 0.0
    %78 = vmatpush.msra.mxu0 0.0
    %79 = vmatpush.msra.mxu0 %v28
    %80 = vmatpush.msra.mxu0 %v27
    %81 = vmatpush.msra.mxu0 %v26
    %82 = vmatpush.msra.mxu0 %v25
    %83 = vmatpush.msra.mxu0 %v24
    %84 = vmatpush.msra.mxu0 %v23
    %85 = vmatpush.msra.mxu0 %v22
    %86 = vmatpush.msra.mxu0 %v21
    %87 = vmatmul.f32.gmra.mxu0 %v69
    %v88 = vpop.f32.mrf.mxu0
    %v89 = vadd.f32 0.0, %v88
    %90 = vdwg.mxu0
    %91 = vset.pattern.permute.xlu0 2
    %92 = vperm.xlu0 %91, %v29
    %v93 = vpop.permute.xlu0 %92
    %vm94 = vcmp.eq.s32.totalorder %v93, %v31
    %v95 = vsel %vm94, 1, 0
    %v96 = vcvt.s32.f32 %v95
    %v98 = vsel %vm38, %v96, 0
    %100 = vmatpush.msra.mxu0 0.0
    %101 = vmatpush.msra.mxu0 0.0
    %102 = vmatpush.msra.mxu0 0.0
    %103 = vmatpush.msra.mxu0 0.0
    %104 = vmatpush.msra.mxu0 0.0
    %105 = vmatpush.msra.mxu0 0.0
    %106 = vmatpush.msra.mxu0 0.0
    %107 = vmatpush.msra.mxu0 0.0
    %108 = vmatpush.msra.mxu0 %v28
    %109 = vmatpush.msra.mxu0 %v27
    %110 = vmatpush.msra.mxu0 %v26
    %111 = vmatpush.msra.mxu0 %v25
    %112 = vmatpush.msra.mxu0 %v24
    %113 = vmatpush.msra.mxu0 %v23
    %114 = vmatpush.msra.mxu0 %v22
    %115 = vmatpush.msra.mxu0 %v21
    %116 = vmatmul.f32.gmra.mxu0 %v98
    %v117 = vpop.f32.mrf.mxu0
    %v118 = vadd.f32 0.0, %v117
    %119 = vdwg.mxu0
    %120 = vset.pattern.permute.xlu0 3
    %121 = vperm.xlu0 %120, %v29
    %v122 = vpop.permute.xlu0 %121
    %vm123 = vcmp.eq.s32.totalorder %v122, %v31
    %v124 = vsel %vm123, 1, 0
    %v125 = vcvt.s32.f32 %v124
    %v127 = vsel %vm38, %v125, 0
    %129 = vmatpush.msra.mxu0 0.0
    %130 = vmatpush.msra.mxu0 0.0
    %131 = vmatpush.msra.mxu0 0.0
    %132 = vmatpush.msra.mxu0 0.0
    %133 = vmatpush.msra.mxu0 0.0
    %134 = vmatpush.msra.mxu0 0.0
    %135 = vmatpush.msra.mxu0 0.0
    %136 = vmatpush.msra.mxu0 0.0
    %137 = vmatpush.msra.mxu0 %v28
    %138 = vmatpush.msra.mxu0 %v27
    %139 = vmatpush.msra.mxu0 %v26
    %140 = vmatpush.msra.mxu0 %v25
    %141 = vmatpush.msra.mxu0 %v24
    %142 = vmatpush.msra.mxu0 %v23
    %143 = vmatpush.msra.mxu0 %v22
    %144 = vmatpush.msra.mxu0 %v21
    %145 = vmatmul.f32.gmra.mxu0 %v127
    %v146 = vpop.f32.mrf.mxu0
    %v147 = vadd.f32 0.0, %v146
    %148 = vdwg.mxu0
    %v149 = vld [vmem:[%s2] sm:$0x3]
    %v150 = vld [vmem:[%s3] sm:$0xff]
    %v151 = vld [vmem:[%s3 + $0x8] sm:$0xff]
    %v152 = vld [vmem:[%s4] sm:$0x3]
    %v154 = vperm.slane %v152, 0
    %v155 = vperm.slane %v152, 1
    %vm158 = vcmask 64512
    %v160 = vsel %vm158, %v149, 0
    %162 = vmatpush.msra.mxu0 0.0
    %163 = vmatpush.msra.mxu0 0.0
    %164 = vmatpush.msra.mxu0 0.0
    %165 = vmatpush.msra.mxu0 0.0
    %166 = vmatpush.msra.mxu0 0.0
    %167 = vmatpush.msra.mxu0 0.0
    %168 = vmatpush.msra.mxu0 0.0
    %169 = vmatpush.msra.mxu0 0.0
    %170 = vmatpush.msra.mxu0 0.0
    %171 = vmatpush.msra.mxu0 0.0
    %172 = vmatpush.msra.mxu0 0.0
    %173 = vmatpush.msra.mxu0 0.0
    %174 = vmatpush.msra.mxu0 0.0
    %175 = vmatpush.msra.mxu0 0.0
    %176 = vmatpush.msra.mxu0 0.0
    %177 = vmatpush.msra.mxu0 %v150
    %178 = vmatmul.f32.gmra.mxu0 %v160
    %v179 = vpop.f32.mrf.mxu0
    %v180 = vadd.f32 %v154, %v179
    %181 = vdwg.mxu0
    %182 = vmatpush.msra.mxu0 0.0
    %183 = vmatpush.msra.mxu0 0.0
    %184 = vmatpush.msra.mxu0 0.0
    %185 = vmatpush.msra.mxu0 0.0
    %186 = vmatpush.msra.mxu0 0.0
    %187 = vmatpush.msra.mxu0 0.0
    %188 = vmatpush.msra.mxu0 0.0
    %189 = vmatpush.msra.mxu0 0.0
    %190 = vmatpush.msra.mxu0 0.0
    %191 = vmatpush.msra.mxu0 0.0
    %192 = vmatpush.msra.mxu0 0.0
    %193 = vmatpush.msra.mxu0 0.0
    %194 = vmatpush.msra.mxu0 0.0
    %195 = vmatpush.msra.mxu0 0.0
    %196 = vmatpush.msra.mxu0 0.0
    %197 = vmatpush.msra.mxu0 %v151
    %198 = vmatmul.f32.gmra.mxu0 %v160
    %v199 = vpop.f32.mrf.mxu0
    %v200 = vadd.f32 %v155, %v199
    %201 = vdwg.mxu0
    %203 = vrot.lane.b32.xlu0 %v89, 32
    %v204 = vpop.permute.xlu0 %203
    %207 = vrot.lane.b32.xlu0 %v118, 64
    %v208 = vpop.permute.xlu0 %207
    %211 = vrot.lane.b32.xlu0 %v147, 96
    %v212 = vpop.permute.xlu0 %211
    %vm214 = vcmask 261120
    %v215 = vsel %vm214, %v60, %v204
    %v216 = vsel %vm38, %v215, %v208
    %vm217 = vcmask 785408
    %v218 = vsel %vm217, %v216, %v212
    %v222 = vrot.slane %v180, 6
    %v223 = vrot.slane %v200, 4
    %vm224 = vcmask 1041408
    %v225 = vsel %vm224, %v218, %v222
    %vm226 = vcmask 1043456
    %v227 = vsel %vm226, %v225, %v223
    %229 = vst [vmem:[#allocation2] sm:$0x3f] %v227
    // Predicated region
    $region22: #{tpu_custom_call.1} parent=1 // pred_check
      _
    $region23: #{tpu_custom_call.1} parent=1 // pred_check_branch
      %231 = sbr.rel (0) target = $region25
    $region24: #{tpu_custom_call.1} parent=1 // pred_region
      %233 = vsyncadd [#allocation3], 0
      %s235 = sshll.u32 [#allocation2], 4
      %s236 = int_to_ptr.vmem [resolvable:$true] %s235
      %s237 = sshll.u32 %s5, 4
      %s238 = int_to_ptr.hbm [resolvable:$true] %s237
      %240 = dma.vmem_to_hbm [thread:$0]  %s236, 96, %s238, [#allocation3]
    $region25: #{tpu_custom_call.1} parent=1 // pred_fallthru
      _
    // Predicated region
    $region26: #{tpu_custom_call.1} parent=1 // pred_check
      _
    $region27: #{tpu_custom_call.1} parent=1 // pred_check_branch
      %242 = sbr.rel (0) target = $region29
    $region28: #{tpu_custom_call.1} parent=1 // pred_region
      %244 = dma.done [#allocation3], 96
    $region29: #{tpu_custom_call.1} parent=1 // pred_fallthru
      _
    %245 = vsyncpa [#allocation3], 1

</llo_original>
